<compile_context>
chip_gen: v5e
topology: v5e:2x2
jax: 0.10.0
libtpu: 0.0.40
codegen_flags: <defaults>
</compile_context>

<pallas_src>
import functools

import jax
import jax.numpy as jnp
import numpy as np
from jax.experimental import pallas as pl
from jax.experimental.pallas import tpu as pltpu


_LAYER_INDEX = {'conv1': 0, 'conv2': 1}
_SUBLANE = 8          # f32 sublane tile
_NB_MAX = 32          # images per grid step cap (~200 KB VMEM each -> <=6.4 MiB, fits v5e)


def _round_up(x, m):
    return (x + m - 1) // m * m


def _build_tap_masks(H, W):
    """masks[tap, y*W+x] = 1.0 iff 3x3 tap (dy,dx)=divmod(tap,3) reads an in-bounds pixel
    for output (y, x) under 'same' (pad=1) convolution; 0.0 where the halo is read."""
    yy, xx = np.meshgrid(np.arange(H), np.arange(W), indexing='ij')
    m = np.zeros((9, H * W), np.float32)
    for tap in range(9):
        dy, dx = divmod(tap, 3)
        ok = ((yy + dy - 1 >= 0) & (yy + dy - 1 < H) &
              (xx + dx - 1 >= 0) & (xx + dx - 1 < W))
        m[tap] = ok.reshape(-1).astype(np.float32)
    return m


def _pack_conv3x3_weight(w_oihw, cin_pad):
    """(Cout, Cin, 3, 3) -> (Cout, 9*cin_pad), im2col row order [tap*cin_pad + ci]."""
    cout, cin, kh, kw = w_oihw.shape
    w = jnp.transpose(jnp.asarray(w_oihw, jnp.float32), (0, 2, 3, 1))  # (Cout, 3, 3, Cin)
    if cin_pad > cin:
        w = jnp.pad(w, ((0, 0), (0, 0), (0, 0), (0, cin_pad - cin)))
    return w.reshape(cout, kh * kw * cin_pad)


def _choose_nb(N):
    """Images per grid step.  Keep >=2 grid blocks when N>=2 (v7x has 2 TensorCores);
    cap NB so the im2col/activation scratch fits v5e's 16 MiB scoped VMEM."""
    if N <= 1:
        return 1
    return min(-(-N // 2), _NB_MAX)


# ------------------------------- fused kernel -------------------------------

def _make_fused_kernel(H, W, NB, Cin, Cin_p, C1, C1_p, task_rows, use_l2):
    """task_rows: per task (layer_id, row_start, cpad) into the extended conv matmul."""
    HW = H * W
    L = NB * HW
    num_tasks = len(task_rows)

    def kernel(*refs):
        it = iter(refs)
        x_ref = next(it)                    # (1, Cin, L)   channels on sublanes, batch*HW on lanes
        m_ref = next(it)                    # (9, L)        per-tap halo masks, tiled per image
        w1_ref = next(it)                   # (C1 + sum cpad_l1, 9*Cin_p)
        b1_ref = next(it)
        if use_l2:
            w2_ref = next(it)               # (sum cpad_l2, 9*C1_p)
            b2_ref = next(it)
        out_refs = [next(it) for _ in range(num_tasks)]
        col1_ref = next(it)                 # VMEM scratch (9*Cin_p, L)
        col2_ref = next(it) if use_l2 else None

        def fill_col(col_ref, a, c, c_pad):
            # im2col of a (c, L) into the scratch, tap rows at sublane-aligned offsets.
            if c < c_pad:
                col_ref[...] = jnp.zeros_like(col_ref)   # zero the pad channels (cheap)
            for tap in range(9):                         # static unroll over the 3x3 taps
                dy, dx = divmod(tap, 3)
                off = (dy - 1) * W + (dx - 1)            # flat spatial shift of this tap
                if off == 0:
                    v = a                                # center tap: always in-bounds
                else:
                    # XLU lane rotate; the tiled mask zeroes every wrapped / cross-image read.
                    v = pltpu.roll(a, shift=(-off) % L, axis=1) * m_ref[pl.ds(tap, 1), :]
                col_ref[pl.ds(tap * c_pad, c), :] = v

        x = x_ref[0]                                      # (Cin, L)

        # conv1 (+ all conv1-hooked decoder heads) as ONE matmul.
        fill_col(col1_ref, x, Cin, Cin_p)
        y1 = jnp.dot(w1_ref[...], col1_ref[...],
                     preferred_element_type=jnp.float32) + b1_ref[...]
        for t, (layer, start, cpad) in enumerate(task_rows):
            if layer == 0:
                out_refs[t][0] = y1[start:start + cpad, :]   # lane-dense 8-row store

        if use_l2:
            # conv2 only materializes the decoder-composed rows (relu(h2) is discarded,
            # matching `_ = self.backbone(x)`).
            a1 = jnp.maximum(y1[:C1, :], 0.0)
            fill_col(col2_ref, a1, C1, C1_p)
            y2 = jnp.dot(w2_ref[...], col2_ref[...],
                         preferred_element_type=jnp.float32) + b2_ref[...]
            for t, (layer, start, cpad) in enumerate(task_rows):
                if layer == 1:
                    out_refs[t][0] = y2[start:start + cpad, :]

    return kernel


def _fused_forward(x_nchw, packed, *, meta):
    """x_nchw: (N, Cin, H, W) float32. Returns tuple of per-task outputs in NCHW."""
    N, Cin, H, W = x_nchw.shape
    HW = H * W
    NB = _choose_nb(N)
    G = -(-N // NB)
    Npad = G * NB
    L = NB * HW

    x = x_nchw.astype(jnp.float32).reshape(N, Cin, HW)
    if Npad > N:
        x = jnp.pad(x, ((0, Npad - N), (0, 0), (0, 0)))
    # Fold NB images onto the lane axis: (G, Cin, NB*HW).  No channel padding here.
    x = x.reshape(G, NB, Cin, HW).transpose(0, 2, 1, 3).reshape(G, Cin, L)

    # Halo masks, tiled per image so rolls never leak across image boundaries.
    masks = jnp.asarray(np.tile(_build_tap_masks(H, W), (1, NB)))

    task_rows = meta['task_rows']
    use_l2 = meta['use_l2']

    inputs = [x, masks, packed['w1'], packed['b1']]
    in_specs = [
        pl.BlockSpec((1, Cin, L), lambda g: (g, 0, 0)),
        pl.BlockSpec((9, L), lambda g: (0, 0)),
        pl.BlockSpec(packed['w1'].shape, lambda g: (0, 0)),
        pl.BlockSpec(packed['b1'].shape, lambda g: (0, 0)),
    ]
    if use_l2:
        inputs += [packed['w2'], packed['b2']]
        in_specs += [pl.BlockSpec(packed['w2'].shape, lambda g: (0, 0)),
                     pl.BlockSpec(packed['b2'].shape, lambda g: (0, 0))]

    out_shape = tuple(jax.ShapeDtypeStruct((G, cpad, L), jnp.float32)
                      for (_, _, cpad) in task_rows)
    out_specs = [pl.BlockSpec((1, cpad, L), lambda g: (g, 0, 0))
                 for (_, _, cpad) in task_rows]

    scratch_shapes = [pltpu.VMEM((9 * meta['Cin_p'], L), jnp.float32)]
    if use_l2:
        scratch_shapes.append(pltpu.VMEM((9 * meta['C1_p'], L), jnp.float32))

    outs = pl.pallas_call(
        _make_fused_kernel(H, W, NB, Cin, meta['Cin_p'], meta['C1'], meta['C1_p'],
                           task_rows, use_l2),
        out_shape=out_shape,
        grid=(G,),
        in_specs=in_specs,
        out_specs=out_specs,
        scratch_shapes=scratch_shapes,
        compiler_params=pltpu.CompilerParams(dimension_semantics=("parallel",)),
    )(*inputs)

    results = []
    for t, (_, _, cpad) in enumerate(task_rows):
        o = outs[t].reshape(G, cpad, NB, HW).transpose(0, 2, 1, 3)
        o = o.reshape(Npad, cpad, H, W)
        results.append(o[:N, :meta['couts'][t]])
    return tuple(results)


# ----------------------- MultiTaskModel_hooks analogue ---------------------

class MultiTaskModelHooks:
    """JAX/Pallas analogue of MultiTaskModel_hooks.

    Backbone, hooked intermediates and all task decoders run as one fused Pallas kernel;
    the 1x1 decoder heads are pre-composed into the conv weight matrices at init time.
    """

    def __init__(self, params, tasks, inter_hooks):
        assert set(params['decoders'].keys()) == set(tasks)
        self.params = params
        self.tasks = list(tasks)
        self.inter_hooks = dict(inter_hooks)
        # TODO(synk): hooked activations stay VMEM-resident inside the fused kernel (never
        # written to HBM), so hook_outputs is not populated; forward return values match.
        self.hook_outputs = {}

        bp = params['backbone']
        conv1_w = jnp.asarray(bp['conv1_w'], jnp.float32)
        conv1_b = jnp.asarray(bp['conv1_b'], jnp.float32)
        conv2_w = jnp.asarray(bp['conv2_w'], jnp.float32)
        conv2_b = jnp.asarray(bp['conv2_b'], jnp.float32)
        C1, Cin = conv1_w.shape[:2]
        C2 = conv2_w.shape[0]
        Cin_p = _round_up(Cin, _SUBLANE)
        C1_p = _round_up(C1, _SUBLANE)

        W1p = _pack_conv3x3_weight(conv1_w, Cin_p)        # (C1, 9*Cin_p)
        b1 = conv1_b.reshape(C1, 1)
        W2p = _pack_conv3x3_weight(conv2_w, C1_p)         # (C2, 9*C1_p)
        b2 = conv2_b.reshape(C2, 1)

        # Pre-compose the 1x1 decoder heads into the conv matmuls:
        #   dec(h) = dw @ (W @ col + b) + db = (dw@W) @ col + (dw@b + db)
        w1_rows, b1_rows = [W1p], [b1]                     # h1 rows feed conv2's input
        w2_rows, b2_rows = [], []                          # h2 itself is never needed
        task_rows, couts = [], []
        off1, off2 = C1, 0
        for task in self.tasks:
            name = self.inter_hooks.get(task)
            if name not in _LAYER_INDEX:
                raise Exception('task hook not specified')
            layer = _LAYER_INDEX[name]
            dw = jnp.asarray(params['decoders'][task]['w'], jnp.float32)
            cout = dw.shape[0]
            dw = dw.reshape(cout, -1)
            db = jnp.asarray(params['decoders'][task]['b'], jnp.float32).reshape(cout, 1)
            cpad = _round_up(cout, _SUBLANE)               # 8-row padded -> lane-dense stores
            if layer == 0:
                cw, cb = dw @ W1p, dw @ b1 + db
            else:
                cw, cb = dw @ W2p, dw @ b2 + db
            if cpad > cout:
                cw = jnp.pad(cw, ((0, cpad - cout), (0, 0)))
                cb = jnp.pad(cb, ((0, cpad - cout), (0, 0)))
            if layer == 0:
                w1_rows.append(cw); b1_rows.append(cb)
                task_rows.append((0, off1, cpad)); off1 += cpad
            else:
                w2_rows.append(cw); b2_rows.append(cb)
                task_rows.append((1, off2, cpad)); off2 += cpad
            couts.append(cout)

        use_l2 = len(w2_rows) > 0
        self._packed = {
            'w1': jnp.concatenate(w1_rows, axis=0),
            'b1': jnp.concatenate(b1_rows, axis=0),
        }
        if use_l2:
            self._packed['w2'] = jnp.concatenate(w2_rows, axis=0)
            self._packed['b2'] = jnp.concatenate(b2_rows, axis=0)

        self._meta = dict(Cin=int(Cin), Cin_p=int(Cin_p), C1=int(C1), C1_p=int(C1_p),
                          use_l2=use_l2, task_rows=tuple(task_rows), couts=tuple(couts))
        self._forward = jax.jit(functools.partial(_fused_forward, meta=self._meta))

    def __call__(self, x_nchw):
        outs = self._forward(x_nchw, self._packed)
        return {task: outs[t] for t, task in enumerate(self.tasks)}


# --------------------------------- driver ----------------------------------

def _ref_conv_nchw(x, w, b, pad):
    y = jax.lax.conv_general_dilated(
        x, w, window_strides=(1, 1), padding=pad,
        dimension_numbers=('NCHW', 'OIHW', 'NCHW'))
    return y + b[None, :, None, None]


if __name__ == "__main__":
    key = jax.random.PRNGKey(0)
    N, Cin, H, W = 2, 4, 16, 16
    C1, C2 = 8, 16
    tasks = ['task_a', 'task_b']
    inter_hooks = {'task_a': 'conv1', 'task_b': 'conv2'}

    ks = jax.random.split(key, 9)
    params = {
        'backbone': {
            'conv1_w': 0.1 * jax.random.normal(ks[0], (C1, Cin, 3, 3), jnp.float32),
            'conv1_b': 0.1 * jax.random.normal(ks[1], (C1,), jnp.float32),
            'conv2_w': 0.1 * jax.random.normal(ks[2], (C2, C1, 3, 3), jnp.float32),
            'conv2_b': 0.1 * jax.random.normal(ks[3], (C2,), jnp.float32),
        },
        'decoders': {
            'task_a': {'w': 0.1 * jax.random.normal(ks[4], (2, C1, 1, 1), jnp.float32),
                       'b': 0.1 * jax.random.normal(ks[5], (2,), jnp.float32)},
            'task_b': {'w': 0.1 * jax.random.normal(ks[6], (3, C2, 1, 1), jnp.float32),
                       'b': 0.1 * jax.random.normal(ks[7], (3,), jnp.float32)},
        },
    }
    x = jax.random.normal(ks[8], (N, Cin, H, W), jnp.float32)

    model = MultiTaskModelHooks(params, tasks, inter_hooks)
    out = model(x)
    out = jax.block_until_ready(out)

    # Pure-JAX reference (same semantics as the PyTorch forward with hooks).
    bp = params['backbone']
    h1 = _ref_conv_nchw(x, bp['conv1_w'], bp['conv1_b'], 'SAME')
    a1 = jnp.maximum(h1, 0.0)
    h2 = _ref_conv_nchw(a1, bp['conv2_w'], bp['conv2_b'], 'SAME')
    ref = {
        'task_a': _ref_conv_nchw(h1, params['decoders']['task_a']['w'],
                                 params['decoders']['task_a']['b'], 'VALID'),
        'task_b': _ref_conv_nchw(h2, params['decoders']['task_b']['w'],
                                 params['decoders']['task_b']['b'], 'VALID'),
    }
    for t in tasks:
        assert out[t].shape == ref[t].shape, (t, out[t].shape, ref[t].shape)
        np.testing.assert_allclose(np.asarray(out[t]), np.asarray(ref[t]),
                                   rtol=2e-4, atol=2e-4)

    print("KERNEL_OK")
</pallas_src>

<mosaic_0001>
module attributes {stable_mosaic.version = 11 : i64} {
  func.func @kernel(%arg0: i32, %arg1: memref<1x4x256xf32, #tpu.memory_space<vmem>>, %arg2: memref<9x256xf32, #tpu.memory_space<vmem>>, %arg3: memref<16x72xf32, #tpu.memory_space<vmem>>, %arg4: memref<16x1xf32, #tpu.memory_space<vmem>>, %arg5: memref<8x72xf32, #tpu.memory_space<vmem>>, %arg6: memref<8x1xf32, #tpu.memory_space<vmem>>, %arg7: memref<1x8x256xf32, #tpu.memory_space<vmem>>, %arg8: memref<1x8x256xf32, #tpu.memory_space<vmem>>, %arg9: memref<72x256xf32, #tpu.memory_space<vmem>>, %arg10: memref<72x256xf32, #tpu.memory_space<vmem>>) attributes {dimension_semantics = [#tpu.dimension_semantics<parallel>], iteration_bounds = array<i64: 2>, scalar_prefetch = 0 : i64, scratch_operands = 2 : i64, tpu.core_type = #tpu.core_type<tc>, window_params = [{transform_indices = @transform_0, window_bounds = array<i64: 1, 4, 256>}, {pipeline_mode = #tpu.pipeline_mode<synchronous>, transform_indices = @transform_1, window_bounds = array<i64: 9, 256>}, {pipeline_mode = #tpu.pipeline_mode<synchronous>, transform_indices = @transform_2, window_bounds = array<i64: 16, 72>}, {pipeline_mode = #tpu.pipeline_mode<synchronous>, transform_indices = @transform_3, window_bounds = array<i64: 16, 1>}, {pipeline_mode = #tpu.pipeline_mode<synchronous>, transform_indices = @transform_4, window_bounds = array<i64: 8, 72>}, {pipeline_mode = #tpu.pipeline_mode<synchronous>, transform_indices = @transform_5, window_bounds = array<i64: 8, 1>}, {transform_indices = @transform_6, window_bounds = array<i64: 1, 8, 256>}, {transform_indices = @transform_7, window_bounds = array<i64: 1, 8, 256>}]} {
    %c0 = arith.constant 0 : index
    %c0_0 = arith.constant 0 : index
    %c0_1 = arith.constant 0 : index
    %0 = vector.load %arg1[%c0, %c0_0, %c0_1] : memref<1x4x256xf32, #tpu.memory_space<vmem>>, vector<1x4x256xf32>
    %1 = vector.shape_cast %0 : vector<1x4x256xf32> to vector<4x256xf32>
    %cst = arith.constant 0.000000e+00 : f32
    %2 = vector.broadcast %cst : f32 to vector<72x256xf32>
    %c0_2 = arith.constant 0 : index
    %c0_3 = arith.constant 0 : index
    %3 = vector.load %arg9[%c0_2, %c0_3] : memref<72x256xf32, #tpu.memory_space<vmem>>, vector<72x256xf32>
    tpu.vector_store %arg9[%c0_2, %c0_3], %2 {strides = array<i32>} : memref<72x256xf32, #tpu.memory_space<vmem>>, vector<72x256xf32>,
    %c17_i32 = arith.constant 17 : i32
    %4 = tpu.dynamic_rotate %1 by %c17_i32 dim 1 : vector<4x256xf32>, i32 -> vector<4x256xf32>
    %c0_4 = arith.constant 0 : index
    %c0_5 = arith.constant 0 : index
    %5 = vector.load %arg2[%c0_4, %c0_5] : memref<9x256xf32, #tpu.memory_space<vmem>>, vector<1x256xf32>
    %6 = vector.broadcast %5 : vector<1x256xf32> to vector<4x256xf32>
    %7 = arith.mulf %4, %6 : vector<4x256xf32>
    %c0_6 = arith.constant 0 : index
    %c0_7 = arith.constant 0 : index
    %8 = vector.load %arg9[%c0_6, %c0_7] : memref<72x256xf32, #tpu.memory_space<vmem>>, vector<4x256xf32>
    tpu.vector_store %arg9[%c0_6, %c0_7], %7 {strides = array<i32>} : memref<72x256xf32, #tpu.memory_space<vmem>>, vector<4x256xf32>,
    %c16_i32 = arith.constant 16 : i32
    %9 = tpu.dynamic_rotate %1 by %c16_i32 dim 1 : vector<4x256xf32>, i32 -> vector<4x256xf32>
    %c1 = arith.constant 1 : index
    %c0_8 = arith.constant 0 : index
    %10 = vector.load %arg2[%c1, %c0_8] : memref<9x256xf32, #tpu.memory_space<vmem>>, vector<1x256xf32>
    %11 = vector.broadcast %10 : vector<1x256xf32> to vector<4x256xf32>
    %12 = arith.mulf %9, %11 : vector<4x256xf32>
    %c8 = arith.constant 8 : index
    %c0_9 = arith.constant 0 : index
    %13 = vector.load %arg9[%c8, %c0_9] : memref<72x256xf32, #tpu.memory_space<vmem>>, vector<4x256xf32>
    tpu.vector_store %arg9[%c8, %c0_9], %12 {strides = array<i32>} : memref<72x256xf32, #tpu.memory_space<vmem>>, vector<4x256xf32>,
    %c15_i32 = arith.constant 15 : i32
    %14 = tpu.dynamic_rotate %1 by %c15_i32 dim 1 : vector<4x256xf32>, i32 -> vector<4x256xf32>
    %c2 = arith.constant 2 : index
    %c0_10 = arith.constant 0 : index
    %15 = vector.load %arg2[%c2, %c0_10] : memref<9x256xf32, #tpu.memory_space<vmem>>, vector<1x256xf32>
    %16 = vector.broadcast %15 : vector<1x256xf32> to vector<4x256xf32>
    %17 = arith.mulf %14, %16 : vector<4x256xf32>
    %c16 = arith.constant 16 : index
    %c0_11 = arith.constant 0 : index
    %18 = vector.load %arg9[%c16, %c0_11] : memref<72x256xf32, #tpu.memory_space<vmem>>, vector<4x256xf32>
    tpu.vector_store %arg9[%c16, %c0_11], %17 {strides = array<i32>} : memref<72x256xf32, #tpu.memory_space<vmem>>, vector<4x256xf32>,
    %c1_i32 = arith.constant 1 : i32
    %19 = tpu.dynamic_rotate %1 by %c1_i32 dim 1 : vector<4x256xf32>, i32 -> vector<4x256xf32>
    %c3 = arith.constant 3 : index
    %c0_12 = arith.constant 0 : index
    %20 = vector.load %arg2[%c3, %c0_12] : memref<9x256xf32, #tpu.memory_space<vmem>>, vector<1x256xf32>
    %21 = vector.broadcast %20 : vector<1x256xf32> to vector<4x256xf32>
    %22 = arith.mulf %19, %21 : vector<4x256xf32>
    %c24 = arith.constant 24 : index
    %c0_13 = arith.constant 0 : index
    %23 = vector.load %arg9[%c24, %c0_13] : memref<72x256xf32, #tpu.memory_space<vmem>>, vector<4x256xf32>
    tpu.vector_store %arg9[%c24, %c0_13], %22 {strides = array<i32>} : memref<72x256xf32, #tpu.memory_space<vmem>>, vector<4x256xf32>,
    %c32 = arith.constant 32 : index
    %c0_14 = arith.constant 0 : index
    %24 = vector.load %arg9[%c32, %c0_14] : memref<72x256xf32, #tpu.memory_space<vmem>>, vector<4x256xf32>
    tpu.vector_store %arg9[%c32, %c0_14], %1 {strides = array<i32>} : memref<72x256xf32, #tpu.memory_space<vmem>>, vector<4x256xf32>,
    %c255_i32 = arith.constant 255 : i32
    %25 = tpu.dynamic_rotate %1 by %c255_i32 dim 1 : vector<4x256xf32>, i32 -> vector<4x256xf32>
    %c5 = arith.constant 5 : index
    %c0_15 = arith.constant 0 : index
    %26 = vector.load %arg2[%c5, %c0_15] : memref<9x256xf32, #tpu.memory_space<vmem>>, vector<1x256xf32>
    %27 = vector.broadcast %26 : vector<1x256xf32> to vector<4x256xf32>
    %28 = arith.mulf %25, %27 : vector<4x256xf32>
    %c40 = arith.constant 40 : index
    %c0_16 = arith.constant 0 : index
    %29 = vector.load %arg9[%c40, %c0_16] : memref<72x256xf32, #tpu.memory_space<vmem>>, vector<4x256xf32>
    tpu.vector_store %arg9[%c40, %c0_16], %28 {strides = array<i32>} : memref<72x256xf32, #tpu.memory_space<vmem>>, vector<4x256xf32>,
    %c241_i32 = arith.constant 241 : i32
    %30 = tpu.dynamic_rotate %1 by %c241_i32 dim 1 : vector<4x256xf32>, i32 -> vector<4x256xf32>
    %c6 = arith.constant 6 : index
    %c0_17 = arith.constant 0 : index
    %31 = vector.load %arg2[%c6, %c0_17] : memref<9x256xf32, #tpu.memory_space<vmem>>, vector<1x256xf32>
    %32 = vector.broadcast %31 : vector<1x256xf32> to vector<4x256xf32>
    %33 = arith.mulf %30, %32 : vector<4x256xf32>
    %c48 = arith.constant 48 : index
    %c0_18 = arith.constant 0 : index
    %34 = vector.load %arg9[%c48, %c0_18] : memref<72x256xf32, #tpu.memory_space<vmem>>, vector<4x256xf32>
    tpu.vector_store %arg9[%c48, %c0_18], %33 {strides = array<i32>} : memref<72x256xf32, #tpu.memory_space<vmem>>, vector<4x256xf32>,
    %c240_i32 = arith.constant 240 : i32
    %35 = tpu.dynamic_rotate %1 by %c240_i32 dim 1 : vector<4x256xf32>, i32 -> vector<4x256xf32>
    %c7 = arith.constant 7 : index
    %c0_19 = arith.constant 0 : index
    %36 = vector.load %arg2[%c7, %c0_19] : memref<9x256xf32, #tpu.memory_space<vmem>>, vector<1x256xf32>
    %37 = vector.broadcast %36 : vector<1x256xf32> to vector<4x256xf32>
    %38 = arith.mulf %35, %37 : vector<4x256xf32>
    %c56 = arith.constant 56 : index
    %c0_20 = arith.constant 0 : index
    %39 = vector.load %arg9[%c56, %c0_20] : memref<72x256xf32, #tpu.memory_space<vmem>>, vector<4x256xf32>
    tpu.vector_store %arg9[%c56, %c0_20], %38 {strides = array<i32>} : memref<72x256xf32, #tpu.memory_space<vmem>>, vector<4x256xf32>,
    %c239_i32 = arith.constant 239 : i32
    %40 = tpu.dynamic_rotate %1 by %c239_i32 dim 1 : vector<4x256xf32>, i32 -> vector<4x256xf32>
    %c8_21 = arith.constant 8 : index
    %c0_22 = arith.constant 0 : index
    %41 = vector.load %arg2[%c8_21, %c0_22] : memref<9x256xf32, #tpu.memory_space<vmem>>, vector<1x256xf32>
    %42 = vector.broadcast %41 : vector<1x256xf32> to vector<4x256xf32>
    %43 = arith.mulf %40, %42 : vector<4x256xf32>
    %c64 = arith.constant 64 : index
    %c0_23 = arith.constant 0 : index
    %44 = vector.load %arg9[%c64, %c0_23] : memref<72x256xf32, #tpu.memory_space<vmem>>, vector<4x256xf32>
    tpu.vector_store %arg9[%c64, %c0_23], %43 {strides = array<i32>} : memref<72x256xf32, #tpu.memory_space<vmem>>, vector<4x256xf32>,
    %c0_24 = arith.constant 0 : index
    %c0_25 = arith.constant 0 : index
    %45 = vector.load %arg3[%c0_24, %c0_25] : memref<16x72xf32, #tpu.memory_space<vmem>>, vector<16x72xf32>
    %c0_26 = arith.constant 0 : index
    %c0_27 = arith.constant 0 : index
    %46 = vector.load %arg9[%c0_26, %c0_27] : memref<72x256xf32, #tpu.memory_space<vmem>>, vector<72x256xf32>
    %cst_28 = arith.constant dense<0.000000e+00> : vector<16x256xf32>
    %47 = tpu.matmul %45, %46, %cst_28 {dimension_numbers = #tpu.dot_dimension_numbers<[1], [0], [0], [1], [0, 0, 1, 1], [], []>} : vector<16x72xf32>, vector<72x256xf32>, vector<16x256xf32> -> vector<16x256xf32>
    %c0_29 = arith.constant 0 : index
    %c0_30 = arith.constant 0 : index
    %48 = vector.load %arg4[%c0_29, %c0_30] : memref<16x1xf32, #tpu.memory_space<vmem>>, vector<16x1xf32>
    %49 = vector.broadcast %48 : vector<16x1xf32> to vector<16x256xf32>
    %50 = arith.addf %47, %49 : vector<16x256xf32>
    %51 = vector.extract_strided_slice %50 {offsets = [8, 0], sizes = [8, 256], strides = [1, 1]} : vector<16x256xf32> to vector<8x256xf32>
    %c0_31 = arith.constant 0 : index
    %c0_32 = arith.constant 0 : index
    %c0_33 = arith.constant 0 : index
    %52 = vector.load %arg7[%c0_31, %c0_32, %c0_33] : memref<1x8x256xf32, #tpu.memory_space<vmem>>, vector<1x8x256xf32>
    %53 = vector.shape_cast %52 : vector<1x8x256xf32> to vector<8x256xf32>
    %54 = vector.shape_cast %51 : vector<8x256xf32> to vector<1x8x256xf32>
    tpu.vector_store %arg7[%c0_31, %c0_32, %c0_33], %54 {strides = array<i32>} : memref<1x8x256xf32, #tpu.memory_space<vmem>>, vector<1x8x256xf32>,
    %55 = vector.extract_strided_slice %50 {offsets = [0, 0], sizes = [8, 256], strides = [1, 1]} : vector<16x256xf32> to vector<8x256xf32>
    %cst_34 = arith.constant 0.000000e+00 : f32
    %56 = vector.broadcast %cst_34 : f32 to vector<8x256xf32>
    %57 = arith.maximumf %55, %56 : vector<8x256xf32>
    %c17_i32_35 = arith.constant 17 : i32
    %58 = tpu.dynamic_rotate %57 by %c17_i32_35 dim 1 : vector<8x256xf32>, i32 -> vector<8x256xf32>
    %c0_36 = arith.constant 0 : index
    %c0_37 = arith.constant 0 : index
    %59 = vector.load %arg2[%c0_36, %c0_37] : memref<9x256xf32, #tpu.memory_space<vmem>>, vector<1x256xf32>
    %60 = vector.broadcast %59 : vector<1x256xf32> to vector<8x256xf32>
    %61 = arith.mulf %58, %60 : vector<8x256xf32>
    %c0_38 = arith.constant 0 : index
    %c0_39 = arith.constant 0 : index
    %62 = vector.load %arg10[%c0_38, %c0_39] : memref<72x256xf32, #tpu.memory_space<vmem>>, vector<8x256xf32>
    tpu.vector_store %arg10[%c0_38, %c0_39], %61 {strides = array<i32>} : memref<72x256xf32, #tpu.memory_space<vmem>>, vector<8x256xf32>,
    %c16_i32_40 = arith.constant 16 : i32
    %63 = tpu.dynamic_rotate %57 by %c16_i32_40 dim 1 : vector<8x256xf32>, i32 -> vector<8x256xf32>
    %c1_41 = arith.constant 1 : index
    %c0_42 = arith.constant 0 : index
    %64 = vector.load %arg2[%c1_41, %c0_42] : memref<9x256xf32, #tpu.memory_space<vmem>>, vector<1x256xf32>
    %65 = vector.broadcast %64 : vector<1x256xf32> to vector<8x256xf32>
    %66 = arith.mulf %63, %65 : vector<8x256xf32>
    %c8_43 = arith.constant 8 : index
    %c0_44 = arith.constant 0 : index
    %67 = vector.load %arg10[%c8_43, %c0_44] : memref<72x256xf32, #tpu.memory_space<vmem>>, vector<8x256xf32>
    tpu.vector_store %arg10[%c8_43, %c0_44], %66 {strides = array<i32>} : memref<72x256xf32, #tpu.memory_space<vmem>>, vector<8x256xf32>,
    %c15_i32_45 = arith.constant 15 : i32
    %68 = tpu.dynamic_rotate %57 by %c15_i32_45 dim 1 : vector<8x256xf32>, i32 -> vector<8x256xf32>
    %c2_46 = arith.constant 2 : index
    %c0_47 = arith.constant 0 : index
    %69 = vector.load %arg2[%c2_46, %c0_47] : memref<9x256xf32, #tpu.memory_space<vmem>>, vector<1x256xf32>
    %70 = vector.broadcast %69 : vector<1x256xf32> to vector<8x256xf32>
    %71 = arith.mulf %68, %70 : vector<8x256xf32>
    %c16_48 = arith.constant 16 : index
    %c0_49 = arith.constant 0 : index
    %72 = vector.load %arg10[%c16_48, %c0_49] : memref<72x256xf32, #tpu.memory_space<vmem>>, vector<8x256xf32>
    tpu.vector_store %arg10[%c16_48, %c0_49], %71 {strides = array<i32>} : memref<72x256xf32, #tpu.memory_space<vmem>>, vector<8x256xf32>,
    %c1_i32_50 = arith.constant 1 : i32
    %73 = tpu.dynamic_rotate %57 by %c1_i32_50 dim 1 : vector<8x256xf32>, i32 -> vector<8x256xf32>
    %c3_51 = arith.constant 3 : index
    %c0_52 = arith.constant 0 : index
    %74 = vector.load %arg2[%c3_51, %c0_52] : memref<9x256xf32, #tpu.memory_space<vmem>>, vector<1x256xf32>
    %75 = vector.broadcast %74 : vector<1x256xf32> to vector<8x256xf32>
    %76 = arith.mulf %73, %75 : vector<8x256xf32>
    %c24_53 = arith.constant 24 : index
    %c0_54 = arith.constant 0 : index
    %77 = vector.load %arg10[%c24_53, %c0_54] : memref<72x256xf32, #tpu.memory_space<vmem>>, vector<8x256xf32>
    tpu.vector_store %arg10[%c24_53, %c0_54], %76 {strides = array<i32>} : memref<72x256xf32, #tpu.memory_space<vmem>>, vector<8x256xf32>,
    %c32_55 = arith.constant 32 : index
    %c0_56 = arith.constant 0 : index
    %78 = vector.load %arg10[%c32_55, %c0_56] : memref<72x256xf32, #tpu.memory_space<vmem>>, vector<8x256xf32>
    tpu.vector_store %arg10[%c32_55, %c0_56], %57 {strides = array<i32>} : memref<72x256xf32, #tpu.memory_space<vmem>>, vector<8x256xf32>,
    %c255_i32_57 = arith.constant 255 : i32
    %79 = tpu.dynamic_rotate %57 by %c255_i32_57 dim 1 : vector<8x256xf32>, i32 -> vector<8x256xf32>
    %c5_58 = arith.constant 5 : index
    %c0_59 = arith.constant 0 : index
    %80 = vector.load %arg2[%c5_58, %c0_59] : memref<9x256xf32, #tpu.memory_space<vmem>>, vector<1x256xf32>
    %81 = vector.broadcast %80 : vector<1x256xf32> to vector<8x256xf32>
    %82 = arith.mulf %79, %81 : vector<8x256xf32>
    %c40_60 = arith.constant 40 : index
    %c0_61 = arith.constant 0 : index
    %83 = vector.load %arg10[%c40_60, %c0_61] : memref<72x256xf32, #tpu.memory_space<vmem>>, vector<8x256xf32>
    tpu.vector_store %arg10[%c40_60, %c0_61], %82 {strides = array<i32>} : memref<72x256xf32, #tpu.memory_space<vmem>>, vector<8x256xf32>,
    %c241_i32_62 = arith.constant 241 : i32
    %84 = tpu.dynamic_rotate %57 by %c241_i32_62 dim 1 : vector<8x256xf32>, i32 -> vector<8x256xf32>
    %c6_63 = arith.constant 6 : index
    %c0_64 = arith.constant 0 : index
    %85 = vector.load %arg2[%c6_63, %c0_64] : memref<9x256xf32, #tpu.memory_space<vmem>>, vector<1x256xf32>
    %86 = vector.broadcast %85 : vector<1x256xf32> to vector<8x256xf32>
    %87 = arith.mulf %84, %86 : vector<8x256xf32>
    %c48_65 = arith.constant 48 : index
    %c0_66 = arith.constant 0 : index
    %88 = vector.load %arg10[%c48_65, %c0_66] : memref<72x256xf32, #tpu.memory_space<vmem>>, vector<8x256xf32>
    tpu.vector_store %arg10[%c48_65, %c0_66], %87 {strides = array<i32>} : memref<72x256xf32, #tpu.memory_space<vmem>>, vector<8x256xf32>,
    %c240_i32_67 = arith.constant 240 : i32
    %89 = tpu.dynamic_rotate %57 by %c240_i32_67 dim 1 : vector<8x256xf32>, i32 -> vector<8x256xf32>
    %c7_68 = arith.constant 7 : index
    %c0_69 = arith.constant 0 : index
    %90 = vector.load %arg2[%c7_68, %c0_69] : memref<9x256xf32, #tpu.memory_space<vmem>>, vector<1x256xf32>
    %91 = vector.broadcast %90 : vector<1x256xf32> to vector<8x256xf32>
    %92 = arith.mulf %89, %91 : vector<8x256xf32>
    %c56_70 = arith.constant 56 : index
    %c0_71 = arith.constant 0 : index
    %93 = vector.load %arg10[%c56_70, %c0_71] : memref<72x256xf32, #tpu.memory_space<vmem>>, vector<8x256xf32>
    tpu.vector_store %arg10[%c56_70, %c0_71], %92 {strides = array<i32>} : memref<72x256xf32, #tpu.memory_space<vmem>>, vector<8x256xf32>,
    %c239_i32_72 = arith.constant 239 : i32
    %94 = tpu.dynamic_rotate %57 by %c239_i32_72 dim 1 : vector<8x256xf32>, i32 -> vector<8x256xf32>
    %c8_73 = arith.constant 8 : index
    %c0_74 = arith.constant 0 : index
    %95 = vector.load %arg2[%c8_73, %c0_74] : memref<9x256xf32, #tpu.memory_space<vmem>>, vector<1x256xf32>
    %96 = vector.broadcast %95 : vector<1x256xf32> to vector<8x256xf32>
    %97 = arith.mulf %94, %96 : vector<8x256xf32>
    %c64_75 = arith.constant 64 : index
    %c0_76 = arith.constant 0 : index
    %98 = vector.load %arg10[%c64_75, %c0_76] : memref<72x256xf32, #tpu.memory_space<vmem>>, vector<8x256xf32>
    tpu.vector_store %arg10[%c64_75, %c0_76], %97 {strides = array<i32>} : memref<72x256xf32, #tpu.memory_space<vmem>>, vector<8x256xf32>,
    %c0_77 = arith.constant 0 : index
    %c0_78 = arith.constant 0 : index
    %99 = vector.load %arg5[%c0_77, %c0_78] : memref<8x72xf32, #tpu.memory_space<vmem>>, vector<8x72xf32>
    %c0_79 = arith.constant 0 : index
    %c0_80 = arith.constant 0 : index
    %100 = vector.load %arg10[%c0_79, %c0_80] : memref<72x256xf32, #tpu.memory_space<vmem>>, vector<72x256xf32>
    %cst_81 = arith.constant dense<0.000000e+00> : vector<8x256xf32>
    %101 = tpu.matmul %99, %100, %cst_81 {dimension_numbers = #tpu.dot_dimension_numbers<[1], [0], [0], [1], [0, 0, 1, 1], [], []>} : vector<8x72xf32>, vector<72x256xf32>, vector<8x256xf32> -> vector<8x256xf32>
    %c0_82 = arith.constant 0 : index
    %c0_83 = arith.constant 0 : index
    %102 = vector.load %arg6[%c0_82, %c0_83] : memref<8x1xf32, #tpu.memory_space<vmem>>, vector<8x1xf32>
    %103 = vector.broadcast %102 : vector<8x1xf32> to vector<8x256xf32>
    %104 = arith.addf %101, %103 : vector<8x256xf32>
    %c0_84 = arith.constant 0 : index
    %c0_85 = arith.constant 0 : index
    %c0_86 = arith.constant 0 : index
    %105 = vector.load %arg8[%c0_84, %c0_85, %c0_86] : memref<1x8x256xf32, #tpu.memory_space<vmem>>, vector<1x8x256xf32>
    %106 = vector.shape_cast %105 : vector<1x8x256xf32> to vector<8x256xf32>
    %107 = vector.shape_cast %104 : vector<8x256xf32> to vector<1x8x256xf32>
    tpu.vector_store %arg8[%c0_84, %c0_85, %c0_86], %107 {strides = array<i32>} : memref<1x8x256xf32, #tpu.memory_space<vmem>>, vector<1x8x256xf32>,
    return
  }
  func.func @transform_0(%arg0: i32) -> (i32, i32, i32) {
    %c0_i32 = arith.constant 0 : i32
    %c0_i32_0 = arith.constant 0 : i32
    %c0_i32_1 = arith.constant 0 : i32
    return %arg0, %c0_i32, %c0_i32_0 : i32, i32, i32
  }
  func.func @transform_1(%arg0: i32) -> (i32, i32) {
    %c0_i32 = arith.constant 0 : i32
    %c0_i32_0 = arith.constant 0 : i32
    %c0_i32_1 = arith.constant 0 : i32
    return %c0_i32, %c0_i32_0 : i32, i32
  }
  func.func @transform_2(%arg0: i32) -> (i32, i32) {
    %c0_i32 = arith.constant 0 : i32
    %c0_i32_0 = arith.constant 0 : i32
    %c0_i32_1 = arith.constant 0 : i32
    return %c0_i32, %c0_i32_0 : i32, i32
  }
  func.func @transform_3(%arg0: i32) -> (i32, i32) {
    %c0_i32 = arith.constant 0 : i32
    %c0_i32_0 = arith.constant 0 : i32
    %c0_i32_1 = arith.constant 0 : i32
    return %c0_i32, %c0_i32_0 : i32, i32
  }
  func.func @transform_4(%arg0: i32) -> (i32, i32) {
    %c0_i32 = arith.constant 0 : i32
    %c0_i32_0 = arith.constant 0 : i32
    %c0_i32_1 = arith.constant 0 : i32
    return %c0_i32, %c0_i32_0 : i32, i32
  }
  func.func @transform_5(%arg0: i32) -> (i32, i32) {
    %c0_i32 = arith.constant 0 : i32
    %c0_i32_0 = arith.constant 0 : i32
    %c0_i32_1 = arith.constant 0 : i32
    return %c0_i32, %c0_i32_0 : i32, i32
  }
  func.func @transform_6(%arg0: i32) -> (i32, i32, i32) {
    %c0_i32 = arith.constant 0 : i32
    %c0_i32_0 = arith.constant 0 : i32
    %c0_i32_1 = arith.constant 0 : i32
    return %arg0, %c0_i32, %c0_i32_0 : i32, i32, i32
  }
  func.func @transform_7(%arg0: i32) -> (i32, i32, i32) {
    %c0_i32 = arith.constant 0 : i32
    %c0_i32_0 = arith.constant 0 : i32
    %c0_i32_1 = arith.constant 0 : i32
    return %arg0, %c0_i32, %c0_i32_0 : i32, i32, i32
  }
}

</mosaic_0001>

<llo_original>
// kernel: _fused_forward.1
$region0: #{_fused_forward.1}
  #allocation0 [shape = 'u32[]', space=smem, size = 0x4, offset = 0x4, fixed_abs, tag = 'smem constant byte address 0x4 - core index']
  #allocation1 [shape = 'u32[72,128]{1,0:T(1,128)}', space=vmem, size = 0x9000, scoped, tag = 'internal scratch']
  #allocation2 [shape = 'f32[72,256]{1,0:T(8,128)}', space=vmem, size = 0x12000, scoped, tag = 'scratch operand']
  #allocation3 [shape = 'f32[72,256]{1,0:T(8,128)}', space=vmem, size = 0x12000, scoped, tag = 'scratch operand']
  %s0 = inlined_call_operand.vmem [shape: f32[2,4,256], index: 0, kind: input, shape index: {}]
  %s1 = inlined_call_operand.vmem [shape: f32[9,256], index: 1, kind: input, shape index: {}]
  %s2 = inlined_call_operand.vmem [shape: f32[16,72], index: 2, kind: input, shape index: {}]
  %s3 = inlined_call_operand.vmem [shape: f32[16,1], index: 3, kind: input, shape index: {}]
  %s4 = inlined_call_operand.vmem [shape: f32[8,72], index: 4, kind: input, shape index: {}]
  %s5 = inlined_call_operand.vmem [shape: f32[8,1], index: 5, kind: input, shape index: {}]
  %s6 = inlined_call_operand.vmem [shape: f32[2,8,256], index: 6, kind: output, shape index: {0}]
  %s7 = inlined_call_operand.vmem [shape: f32[2,8,256], index: 7, kind: output, shape index: {1}]
  %8 = xla_tuple %s6, %s7
  %s9 = sld [smem:[#allocation0]]
  $region65: #{_fused_forward.1} parent=0
    _
  %s11 = ssub.s32 1, %s9
  %s12 = scalar_select 0, %s11, %s9
  loop: start=0, step=1, limit=4
  $region2: #{_fused_forward.1} parent=0 // loop_pre_header
    _
  $region3: #{_fused_forward.1} parent=0 // loop_header
    %s14 = sphi 0, %s18
    %p15 = scmp.ge.s32.totalorder %s14, 4
    %s24 = sphi 0, %s26
    %s27 = sphi 0, %s24
    %s28 = sphi 0, %s27
    %s44 = sphi 0, %s28
    %s48 = sphi 0, %s48
    %s50 = sphi 0, %s48
    %s51 = sphi 0, %s50
    %s65 = sphi 0, %s51
    %s69 = sphi 0, %s69
    %s71 = sphi 0, %s69
    %s72 = sphi 0, %s71
    %s86 = sphi 0, %s72
    %s90 = sphi 0, %s90
    %s92 = sphi 0, %s90
    %s93 = sphi 0, %s92
    %s107 = sphi 0, %s93
    %s111 = sphi 0, %s111
    %s113 = sphi 0, %s111
    %s114 = sphi 0, %s113
    %s128 = sphi 0, %s114
    %s132 = sphi 0, %s132
    %s134 = sphi 0, %s132
    %s135 = sphi 0, %s134
    %s149 = sphi 0, %s135
    %s155 = sphi 0, %s157
    %s158 = sphi 0, %s155
    %s159 = sphi 0, %s158
    %s175 = sphi 0, %s159
    %s181 = sphi 0, %s183
    %s184 = sphi 0, %s181
    %s185 = sphi 0, %s184
    %s201 = sphi 0, %s185
  $region4: #{_fused_forward.1} parent=0 // loop_header_branch
    %17 = sbr.rel (%p15) target = $region8
  $region5: #{_fused_forward.1} parent=0 // loop_body
    %s19 = ssub.s32 %s14, 1
    %s20 = ssub.s32 %s14, 2
    %s21 = sadd.s32 %s14, 1
    %s22 = ssub.s32 %s14, %s21
    %p23 = scmp.eq.s32.totalorder %s22, 0
    %s25 = sadd.s32 %s24, 1
    %s26 = scalar_select %p23, %s24, %s25
    %p29 = pneg %p23
    %p30 = scmp.eq.s32.totalorder %s14, 1
    %p31 = por %p29, %p30
    %p32 = scmp.ne.s32.totalorder %s24, %s27
    %p33 = scmp.eq.s32.totalorder %s14, 0
    %p34 = por %p32, %p33
    %p35 = scmp.ne.s32.totalorder %s24, %s27
    %p36 = scmp.eq.s32.totalorder %s19, 1
    %p37 = por %p35, %p36
    %p38 = scmp.ne.s32.totalorder %s27, %s28
    %p39 = scmp.eq.s32.totalorder %s19, 0
    %p40 = por %p38, %p39
    %p41 = scmp.ne.s32.totalorder %s27, %s28
    %p42 = scmp.eq.s32.totalorder %s20, 1
    %p43 = por %p41, %p42
    %p45 = scmp.ne.s32.totalorder %s28, %s44
    %p46 = scmp.eq.s32.totalorder %s20, 0
    %p47 = por %p45, %p46
    %s49 = sadd.s32 %s48, 1
    %p52 = scmp.eq.s32.totalorder %s14, 1
    %p53 = scmp.ne.s32.totalorder %s48, %s50
    %p54 = scmp.eq.s32.totalorder %s14, 0
    %p55 = por %p53, %p54
    %p56 = scmp.ne.s32.totalorder %s48, %s50
    %p57 = scmp.eq.s32.totalorder %s19, 1
    %p58 = por %p56, %p57
    %p59 = scmp.ne.s32.totalorder %s50, %s51
    %p60 = scmp.eq.s32.totalorder %s19, 0
    %p61 = por %p59, %p60
    %p62 = scmp.ne.s32.totalorder %s50, %s51
    %p63 = scmp.eq.s32.totalorder %s20, 1
    %p64 = por %p62, %p63
    %p66 = scmp.ne.s32.totalorder %s51, %s65
    %p67 = scmp.eq.s32.totalorder %s20, 0
    %p68 = por %p66, %p67
    %s70 = sadd.s32 %s69, 1
    %p73 = scmp.eq.s32.totalorder %s14, 1
    %p74 = scmp.ne.s32.totalorder %s69, %s71
    %p75 = scmp.eq.s32.totalorder %s14, 0
    %p76 = por %p74, %p75
    %p77 = scmp.ne.s32.totalorder %s69, %s71
    %p78 = scmp.eq.s32.totalorder %s19, 1
    %p79 = por %p77, %p78
    %p80 = scmp.ne.s32.totalorder %s71, %s72
    %p81 = scmp.eq.s32.totalorder %s19, 0
    %p82 = por %p80, %p81
    %p83 = scmp.ne.s32.totalorder %s71, %s72
    %p84 = scmp.eq.s32.totalorder %s20, 1
    %p85 = por %p83, %p84
    %p87 = scmp.ne.s32.totalorder %s72, %s86
    %p88 = scmp.eq.s32.totalorder %s20, 0
    %p89 = por %p87, %p88
    %s91 = sadd.s32 %s90, 1
    %p94 = scmp.eq.s32.totalorder %s14, 1
    %p95 = scmp.ne.s32.totalorder %s90, %s92
    %p96 = scmp.eq.s32.totalorder %s14, 0
    %p97 = por %p95, %p96
    %p98 = scmp.ne.s32.totalorder %s90, %s92
    %p99 = scmp.eq.s32.totalorder %s19, 1
    %p100 = por %p98, %p99
    %p101 = scmp.ne.s32.totalorder %s92, %s93
    %p102 = scmp.eq.s32.totalorder %s19, 0
    %p103 = por %p101, %p102
    %p104 = scmp.ne.s32.totalorder %s92, %s93
    %p105 = scmp.eq.s32.totalorder %s20, 1
    %p106 = por %p104, %p105
    %p108 = scmp.ne.s32.totalorder %s93, %s107
    %p109 = scmp.eq.s32.totalorder %s20, 0
    %p110 = por %p108, %p109
    %s112 = sadd.s32 %s111, 1
    %p115 = scmp.eq.s32.totalorder %s14, 1
    %p116 = scmp.ne.s32.totalorder %s111, %s113
    %p117 = scmp.eq.s32.totalorder %s14, 0
    %p118 = por %p116, %p117
    %p119 = scmp.ne.s32.totalorder %s111, %s113
    %p120 = scmp.eq.s32.totalorder %s19, 1
    %p121 = por %p119, %p120
    %p122 = scmp.ne.s32.totalorder %s113, %s114
    %p123 = scmp.eq.s32.totalorder %s19, 0
    %p124 = por %p122, %p123
    %p125 = scmp.ne.s32.totalorder %s113, %s114
    %p126 = scmp.eq.s32.totalorder %s20, 1
    %p127 = por %p125, %p126
    %p129 = scmp.ne.s32.totalorder %s114, %s128
    %p130 = scmp.eq.s32.totalorder %s20, 0
    %p131 = por %p129, %p130
    %s133 = sadd.s32 %s132, 1
    %p136 = scmp.eq.s32.totalorder %s14, 1
    %p137 = scmp.ne.s32.totalorder %s132, %s134
    %p138 = scmp.eq.s32.totalorder %s14, 0
    %p139 = por %p137, %p138
    %p140 = scmp.ne.s32.totalorder %s132, %s134
    %p141 = scmp.eq.s32.totalorder %s19, 1
    %p142 = por %p140, %p141
    %p143 = scmp.ne.s32.totalorder %s134, %s135
    %p144 = scmp.eq.s32.totalorder %s19, 0
    %p145 = por %p143, %p144
    %p146 = scmp.ne.s32.totalorder %s134, %s135
    %p147 = scmp.eq.s32.totalorder %s20, 1
    %p148 = por %p146, %p147
    %p150 = scmp.ne.s32.totalorder %s135, %s149
    %p151 = scmp.eq.s32.totalorder %s20, 0
    %p152 = por %p150, %p151
    %s153 = ssub.s32 %s14, %s21
    %p154 = scmp.eq.s32.totalorder %s153, 0
    %s156 = sadd.s32 %s155, 1
    %s157 = scalar_select %p154, %s155, %s156
    %p160 = pneg %p154
    %p161 = scmp.eq.s32.totalorder %s14, 1
    %p162 = por %p160, %p161
    %p163 = scmp.ne.s32.totalorder %s155, %s158
    %p164 = scmp.eq.s32.totalorder %s14, 0
    %p165 = por %p163, %p164
    %p166 = scmp.ne.s32.totalorder %s155, %s158
    %p167 = scmp.eq.s32.totalorder %s19, 1
    %p168 = por %p166, %p167
    %p169 = scmp.ne.s32.totalorder %s158, %s159
    %p170 = scmp.eq.s32.totalorder %s19, 0
    %p171 = por %p169, %p170
    %p172 = scmp.ne.s32.totalorder %s158, %s159
    %p173 = scmp.eq.s32.totalorder %s20, 1
    %p174 = por %p172, %p173
    %p176 = scmp.ne.s32.totalorder %s159, %s175
    %p177 = scmp.eq.s32.totalorder %s20, 0
    %p178 = por %p176, %p177
    %s179 = ssub.s32 %s14, %s21
    %p180 = scmp.eq.s32.totalorder %s179, 0
    %s182 = sadd.s32 %s181, 1
    %s183 = scalar_select %p180, %s181, %s182
    %p186 = pneg %p180
    %p187 = scmp.eq.s32.totalorder %s14, 1
    %p188 = por %p186, %p187
    %p189 = scmp.ne.s32.totalorder %s181, %s184
    %p190 = scmp.eq.s32.totalorder %s14, 0
    %p191 = por %p189, %p190
    %p192 = scmp.ne.s32.totalorder %s181, %s184
    %p193 = scmp.eq.s32.totalorder %s19, 1
    %p194 = por %p192, %p193
    %p195 = scmp.ne.s32.totalorder %s184, %s185
    %p196 = scmp.eq.s32.totalorder %s19, 0
    %p197 = por %p195, %p196
    %p198 = scmp.ne.s32.totalorder %s184, %s185
    %p199 = scmp.eq.s32.totalorder %s20, 1
    %p200 = por %p198, %p199
    %p202 = scmp.ne.s32.totalorder %s185, %s201
    %p203 = scmp.eq.s32.totalorder %s20, 0
    %p204 = por %p202, %p203
    %p205 = scmp.le.s32.totalorder 1, %s14
    %p206 = scmp.lt.s32.totalorder %s14, 3
    %p207 = pnand %p205, %p206
    %p208 = pneg %p207
    // Predicated region
    $region9: #{_fused_forward.1} parent=5 // pred_check
      _
    $region10: #{_fused_forward.1} parent=5 // pred_check_branch
      %210 = sbr.rel (%p207) target = $region12
    $region11: #{_fused_forward.1} parent=5 // pred_region
      %s211 = ssub.s32 %s14, 1
      // Predicated region
      $region13: #{_fused_forward.1} parent=11 // pred_check
        %p212 = pneg %p61
      $region14: #{_fused_forward.1} parent=11 // pred_check_branch
        %214 = sbr.rel (%p212) target = $region16
      $region15: #{_fused_forward.1} parent=11 // pred_region
        _
      $region16: #{_fused_forward.1} parent=11 // pred_fallthru
        _
      // Predicated region
      $region17: #{_fused_forward.1} parent=11 // pred_check
        %p215 = pneg %p82
      $region18: #{_fused_forward.1} parent=11 // pred_check_branch
        %217 = sbr.rel (%p215) target = $region20
      $region19: #{_fused_forward.1} parent=11 // pred_region
        _
      $region20: #{_fused_forward.1} parent=11 // pred_fallthru
        _
      // Predicated region
      $region21: #{_fused_forward.1} parent=11 // pred_check
        %p218 = pneg %p103
      $region22: #{_fused_forward.1} parent=11 // pred_check_branch
        %220 = sbr.rel (%p218) target = $region24
      $region23: #{_fused_forward.1} parent=11 // pred_region
        _
      $region24: #{_fused_forward.1} parent=11 // pred_fallthru
        _
      // Predicated region
      $region25: #{_fused_forward.1} parent=11 // pred_check
        %p221 = pneg %p124
      $region26: #{_fused_forward.1} parent=11 // pred_check_branch
        %223 = sbr.rel (%p221) target = $region28
      $region27: #{_fused_forward.1} parent=11 // pred_region
        _
      $region28: #{_fused_forward.1} parent=11 // pred_fallthru
        _
      // Predicated region
      $region29: #{_fused_forward.1} parent=11 // pred_check
        %p224 = pneg %p145
      $region30: #{_fused_forward.1} parent=11 // pred_check_branch
        %226 = sbr.rel (%p224) target = $region32
      $region31: #{_fused_forward.1} parent=11 // pred_region
        _
      $region32: #{_fused_forward.1} parent=11 // pred_fallthru
        _
    $region12: #{_fused_forward.1} parent=5 // pred_fallthru
      _
    %p227 = scmp.lt.s32.totalorder %s14, 2
    // Predicated region
    $region33: #{_fused_forward.1} parent=5 // pred_check
      %p228 = pneg %p227
    $region34: #{_fused_forward.1} parent=5 // pred_check_branch
      %230 = sbr.rel (%p228) target = $region36
    $region35: #{_fused_forward.1} parent=5 // pred_region
      // Predicated region
      $region37: #{_fused_forward.1} parent=35 // pred_check
        %p231 = pneg %p34
      $region38: #{_fused_forward.1} parent=35 // pred_check_branch
        %233 = sbr.rel (%p231) target = $region40
      $region39: #{_fused_forward.1} parent=35 // pred_region
        %p234 = scmp.lt.s32.totalorder %s14, 1
        %s235 = scalar_select %p234, %s14, 1
        %s236 = smul.addr %s235, 2
        %s237 = smul.addr %s236, 4
        %s238 = scalar_lea.vmem %s0, %s237
      $region40: #{_fused_forward.1} parent=35 // pred_fallthru
        _
    $region36: #{_fused_forward.1} parent=5 // pred_fallthru
      _
    %p239 = scmp.le.s32.totalorder 1, %s14
    %p240 = scmp.lt.s32.totalorder %s14, 3
    %p241 = pnand %p239, %p240
    %p242 = pneg %p241
    // Predicated region
    $region41: #{_fused_forward.1} parent=5 // pred_check
      _
    $region42: #{_fused_forward.1} parent=5 // pred_check_branch
      %244 = sbr.rel (%p241) target = $region44
    $region43: #{_fused_forward.1} parent=5 // pred_region
      %s245 = ssub.s32 %s14, 1
      %p246 = scmp.lt.s32.totalorder %s19, 1
      %s247 = scalar_select %p246, %s19, 1
      %s248 = smul.addr %s247, 2
      %s249 = smul.addr %s248, 4
      %s250 = scalar_lea.vmem %s0, %s249
      %p251 = pneg %p40
      %p252 = pneg %p37
      %p253 = pneg %p61
      %p254 = pneg %p58
      %p255 = pneg %p82
      %p256 = pneg %p79
      %p257 = pneg %p103
      %p258 = pneg %p100
      %p259 = pneg %p124
      %p260 = pneg %p121
      %p261 = pneg %p145
      %p262 = pneg %p142
      %p263 = pneg %p171
      %p264 = pneg %p168
      %p265 = scmp.lt.s32.totalorder %s19, 1
      %s266 = scalar_select %p265, %s19, 1
      %s267 = smul.addr %s266, 2
      %s268 = smul.addr %s267, 8
      %s269 = scalar_lea.vmem %s6, %s268
      %p270 = pneg %p197
      %p271 = pneg %p194
      %p272 = scmp.lt.s32.totalorder %s19, 1
      %s273 = scalar_select %p272, %s19, 1
      %s274 = smul.addr %s273, 2
      %s275 = smul.addr %s274, 8
      %s276 = scalar_lea.vmem %s7, %s275
      %p277 = scmp.lt.s32.totalorder %s19, 1
      %s278 = scalar_select %p277, %s19, 1
      %s279 = smul.addr %s278, 2
      %s280 = smul.addr %s279, 4
      %s281 = scalar_lea.vmem %s0, %s280
      %p282 = scmp.lt.s32.totalorder %s19, 1
      %s283 = scalar_select %p282, %s19, 1
      %s284 = smul.addr %s283, 2
      %s285 = smul.addr %s284, 8
      %s286 = scalar_lea.vmem %s6, %s285
      %p287 = scmp.lt.s32.totalorder %s19, 1
      %s288 = scalar_select %p287, %s19, 1
      %s289 = smul.addr %s288, 2
      %s290 = smul.addr %s289, 8
      %s291 = scalar_lea.vmem %s7, %s290
      %v292 = vld [vmem:[%s281] sm:$0xff]
      %293 = vst [vmem:[#allocation2] sm:$0xff] 0.0
      %294 = vst [vmem:[#allocation2 + $0x8] sm:$0xff] 0.0
      %295 = vst [vmem:[#allocation2 + $0x10] sm:$0xff] 0.0
      %296 = vst [vmem:[#allocation2 + $0x18] sm:$0xff] 0.0
      %297 = vst [vmem:[#allocation2 + $0x20] sm:$0xff] 0.0
      %298 = vst [vmem:[#allocation2 + $0x28] sm:$0xff] 0.0
      %299 = vst [vmem:[#allocation2 + $0x30] sm:$0xff] 0.0
      %300 = vst [vmem:[#allocation2 + $0x38] sm:$0xff] 0.0
      %301 = vst [vmem:[#allocation2 + $0x40] sm:$0xff] 0.0
      %302 = vst [vmem:[#allocation2 + $0x48] sm:$0xff] 0.0
      %303 = vst [vmem:[#allocation2 + $0x50] sm:$0xff] 0.0
      %304 = vst [vmem:[#allocation2 + $0x58] sm:$0xff] 0.0
      %305 = vst [vmem:[#allocation2 + $0x60] sm:$0xff] 0.0
      %306 = vst [vmem:[#allocation2 + $0x68] sm:$0xff] 0.0
      %307 = vst [vmem:[#allocation2 + $0x70] sm:$0xff] 0.0
      %308 = vst [vmem:[#allocation2 + $0x78] sm:$0xff] 0.0
      %309 = vst [vmem:[#allocation2 + $0x80] sm:$0xff] 0.0
      %310 = vst [vmem:[#allocation2 + $0x88] sm:$0xff] 0.0
      %312 = vst [vmem:[#allocation1] ss:$2 sm:$0xff] %v292
      %v313 = vld.sshfl [vmem:[#allocation1] sm:$0xff pattern:$0x75316420]
      %v314 = vld.sshfl [vmem:[#allocation1 + $0x8] sm:$0xff pattern:$0x75316420]
      %317 = vrot.lane.b32.xlu0 %v313, 17
      %v318 = vpop.permute.xlu0 %317
      %319 = vrot.lane.b32.xlu0 %v314, 17
      %v320 = vpop.permute.xlu0 %319
      %v321 = vlaneseq
      %v322 = vand.u32 %v321, 127
      %vm323 = vcmp.lt.s32.totalorder %v322, 17
      %v324 = vsel %vm323, %v318, %v320
      %v325 = vsel %vm323, %v320, %v318
      %v326 = vld [vmem:[%s1] ss:$8 sm:$0x3]
      %v328 = vperm.slane %v326, 0
      %v329 = vperm.slane %v326, 1
      %v332 = vmul.f32 %v325, %v328
      %v333 = vmul.f32 %v324, %v329
      %334 = vst [vmem:[#allocation2] sm:$0xf] %v332
      %335 = vst [vmem:[#allocation2 + $0x8] sm:$0xf] %v333
      %336 = vst [vmem:[#allocation1] ss:$2 sm:$0xff] %v292
      %v337 = vld.sshfl [vmem:[#allocation1] sm:$0xff pattern:$0x75316420]
      %v338 = vld.sshfl [vmem:[#allocation1 + $0x8] sm:$0xff pattern:$0x75316420]
      %341 = vrot.lane.b32.xlu0 %v337, 16
      %v342 = vpop.permute.xlu0 %341
      %343 = vrot.lane.b32.xlu0 %v338, 16
      %v344 = vpop.permute.xlu0 %343
      %vm345 = vcmp.lt.s32.totalorder %v322, 16
      %v346 = vsel %vm345, %v342, %v344
      %v347 = vsel %vm345, %v344, %v342
      %s348 = scalar_lea.vmem %s1, 1
      %v349 = vld [vmem:[%s348] ss:$8 sm:$0x3]
      %v351 = vperm.slane %v349, 0
      %v352 = vperm.slane %v349, 1
      %v355 = vmul.f32 %v347, %v351
      %v356 = vmul.f32 %v346, %v352
      %357 = vst [vmem:[#allocation2 + $0x10] sm:$0xf] %v355
      %358 = vst [vmem:[#allocation2 + $0x18] sm:$0xf] %v356
      %359 = vst [vmem:[#allocation1] ss:$2 sm:$0xff] %v292
      %v360 = vld.sshfl [vmem:[#allocation1] sm:$0xff pattern:$0x75316420]
      %v361 = vld.sshfl [vmem:[#allocation1 + $0x8] sm:$0xff pattern:$0x75316420]
      %364 = vrot.lane.b32.xlu0 %v360, 15
      %v365 = vpop.permute.xlu0 %364
      %366 = vrot.lane.b32.xlu0 %v361, 15
      %v367 = vpop.permute.xlu0 %366
      %vm368 = vcmp.lt.s32.totalorder %v322, 15
      %v369 = vsel %vm368, %v365, %v367
      %v370 = vsel %vm368, %v367, %v365
      %s371 = scalar_lea.vmem %s1, 2
      %v372 = vld [vmem:[%s371] ss:$8 sm:$0x3]
      %v374 = vperm.slane %v372, 0
      %v375 = vperm.slane %v372, 1
      %v378 = vmul.f32 %v370, %v374
      %v379 = vmul.f32 %v369, %v375
      %380 = vst [vmem:[#allocation2 + $0x20] sm:$0xf] %v378
      %381 = vst [vmem:[#allocation2 + $0x28] sm:$0xf] %v379
      %382 = vst [vmem:[#allocation1] ss:$2 sm:$0xff] %v292
      %v383 = vld.sshfl [vmem:[#allocation1] sm:$0xff pattern:$0x75316420]
      %v384 = vld.sshfl [vmem:[#allocation1 + $0x8] sm:$0xff pattern:$0x75316420]
      %387 = vrot.lane.b32.xlu0 %v383, 1
      %v388 = vpop.permute.xlu0 %387
      %389 = vrot.lane.b32.xlu0 %v384, 1
      %v390 = vpop.permute.xlu0 %389
      %vm391 = vcmp.lt.s32.totalorder %v322, 1
      %v392 = vsel %vm391, %v388, %v390
      %v393 = vsel %vm391, %v390, %v388
      %s394 = scalar_lea.vmem %s1, 3
      %v395 = vld [vmem:[%s394] ss:$8 sm:$0x3]
      %v397 = vperm.slane %v395, 0
      %v398 = vperm.slane %v395, 1
      %v401 = vmul.f32 %v393, %v397
      %v402 = vmul.f32 %v392, %v398
      %403 = vst [vmem:[#allocation2 + $0x30] sm:$0xf] %v401
      %404 = vst [vmem:[#allocation2 + $0x38] sm:$0xf] %v402
      %405 = vst [vmem:[#allocation1] ss:$2 sm:$0xff] %v292
      %v406 = vld.sshfl [vmem:[#allocation1] sm:$0xff pattern:$0x75316420]
      %v407 = vld.sshfl [vmem:[#allocation1 + $0x8] sm:$0xff pattern:$0x75316420]
      %410 = vst [vmem:[#allocation2 + $0x40] sm:$0xf] %v406
      %411 = vst [vmem:[#allocation2 + $0x48] sm:$0xf] %v407
      %412 = vst [vmem:[#allocation1] ss:$2 sm:$0xff] %v292
      %v413 = vld.sshfl [vmem:[#allocation1] sm:$0xff pattern:$0x75316420]
      %v414 = vld.sshfl [vmem:[#allocation1 + $0x8] sm:$0xff pattern:$0x75316420]
      %417 = vrot.lane.b32.xlu0 %v413, 127
      %v418 = vpop.permute.xlu0 %417
      %419 = vrot.lane.b32.xlu0 %v414, 127
      %v420 = vpop.permute.xlu0 %419
      %vm421 = vcmp.lt.s32.totalorder %v322, 127
      %v422 = vsel %vm421, %v418, %v420
      %v423 = vsel %vm421, %v420, %v418
      %s424 = scalar_lea.vmem %s1, 5
      %v425 = vld [vmem:[%s424] ss:$8 sm:$0x3]
      %v427 = vperm.slane %v425, 0
      %v428 = vperm.slane %v425, 1
      %v431 = vmul.f32 %v422, %v427
      %v432 = vmul.f32 %v423, %v428
      %433 = vst [vmem:[#allocation2 + $0x50] sm:$0xf] %v431
      %434 = vst [vmem:[#allocation2 + $0x58] sm:$0xf] %v432
      %435 = vst [vmem:[#allocation1] ss:$2 sm:$0xff] %v292
      %v436 = vld.sshfl [vmem:[#allocation1] sm:$0xff pattern:$0x75316420]
      %v437 = vld.sshfl [vmem:[#allocation1 + $0x8] sm:$0xff pattern:$0x75316420]
      %440 = vrot.lane.b32.xlu0 %v436, 113
      %v441 = vpop.permute.xlu0 %440
      %442 = vrot.lane.b32.xlu0 %v437, 113
      %v443 = vpop.permute.xlu0 %442
      %vm444 = vcmp.lt.s32.totalorder %v322, 113
      %v445 = vsel %vm444, %v441, %v443
      %v446 = vsel %vm444, %v443, %v441
      %s447 = scalar_lea.vmem %s1, 6
      %v448 = vld [vmem:[%s447] ss:$8 sm:$0x3]
      %v450 = vperm.slane %v448, 0
      %v451 = vperm.slane %v448, 1
      %v454 = vmul.f32 %v445, %v450
      %v455 = vmul.f32 %v446, %v451
      %456 = vst [vmem:[#allocation2 + $0x60] sm:$0xf] %v454
      %457 = vst [vmem:[#allocation2 + $0x68] sm:$0xf] %v455
      %458 = vst [vmem:[#allocation1] ss:$2 sm:$0xff] %v292
      %v459 = vld.sshfl [vmem:[#allocation1] sm:$0xff pattern:$0x75316420]
      %v460 = vld.sshfl [vmem:[#allocation1 + $0x8] sm:$0xff pattern:$0x75316420]
      %463 = vrot.lane.b32.xlu0 %v459, 112
      %v464 = vpop.permute.xlu0 %463
      %465 = vrot.lane.b32.xlu0 %v460, 112
      %v466 = vpop.permute.xlu0 %465
      %vm467 = vcmp.lt.s32.totalorder %v322, 112
      %v468 = vsel %vm467, %v464, %v466
      %v469 = vsel %vm467, %v466, %v464
      %s470 = scalar_lea.vmem %s1, 7
      %v471 = vld [vmem:[%s470] ss:$8 sm:$0x3]
      %v473 = vperm.slane %v471, 0
      %v474 = vperm.slane %v471, 1
      %v477 = vmul.f32 %v468, %v473
      %v478 = vmul.f32 %v469, %v474
      %479 = vst [vmem:[#allocation2 + $0x70] sm:$0xf] %v477
      %480 = vst [vmem:[#allocation2 + $0x78] sm:$0xf] %v478
      %481 = vst [vmem:[#allocation1] ss:$2 sm:$0xff] %v292
      %v482 = vld.sshfl [vmem:[#allocation1] sm:$0xff pattern:$0x75316420]
      %v483 = vld.sshfl [vmem:[#allocation1 + $0x8] sm:$0xff pattern:$0x75316420]
      %486 = vrot.lane.b32.xlu0 %v482, 111
      %v487 = vpop.permute.xlu0 %486
      %488 = vrot.lane.b32.xlu0 %v483, 111
      %v489 = vpop.permute.xlu0 %488
      %vm490 = vcmp.lt.s32.totalorder %v322, 111
      %v491 = vsel %vm490, %v487, %v489
      %v492 = vsel %vm490, %v489, %v487
      %s493 = scalar_lea.vmem %s1, 16
      %v494 = vld [vmem:[%s493] ss:$8 sm:$0x3]
      %v496 = vperm.slane %v494, 0
      %v497 = vperm.slane %v494, 1
      %v500 = vmul.f32 %v491, %v496
      %v501 = vmul.f32 %v492, %v497
      %502 = vst [vmem:[#allocation2 + $0x80] sm:$0xf] %v500
      %503 = vst [vmem:[#allocation2 + $0x88] sm:$0xf] %v501
      %v504 = vld [vmem:[%s2] sm:$0xff]
      %v505 = vld [vmem:[%s2 + $0x8] sm:$0xff]
      %v506 = vld [vmem:[#allocation2] sm:$0xff]
      %v507 = vld [vmem:[#allocation2 + $0x8] sm:$0xff]
      %v508 = vld [vmem:[#allocation2 + $0x10] sm:$0xff]
      %v509 = vld [vmem:[#allocation2 + $0x18] sm:$0xff]
      %v510 = vld [vmem:[#allocation2 + $0x20] sm:$0xff]
      %v511 = vld [vmem:[#allocation2 + $0x28] sm:$0xff]
      %v512 = vld [vmem:[#allocation2 + $0x30] sm:$0xff]
      %v513 = vld [vmem:[#allocation2 + $0x38] sm:$0xff]
      %v514 = vld [vmem:[#allocation2 + $0x40] sm:$0xff]
      %v515 = vld [vmem:[#allocation2 + $0x48] sm:$0xff]
      %v516 = vld [vmem:[#allocation2 + $0x50] sm:$0xff]
      %v517 = vld [vmem:[#allocation2 + $0x58] sm:$0xff]
      %v518 = vld [vmem:[#allocation2 + $0x60] sm:$0xff]
      %v519 = vld [vmem:[#allocation2 + $0x68] sm:$0xff]
      %v520 = vld [vmem:[#allocation2 + $0x70] sm:$0xff]
      %v521 = vld [vmem:[#allocation2 + $0x78] sm:$0xff]
      %v522 = vld [vmem:[#allocation2 + $0x80] sm:$0xff]
      %v523 = vld [vmem:[#allocation2 + $0x88] sm:$0xff]
      %v524 = vld [vmem:[%s3] sm:$0xff]
      %v525 = vld [vmem:[%s3 + $0x8] sm:$0xff]
      %527 = vset.pattern.permute.xlu0 0
      %528 = vperm.xlu0 %527, %v524
      %v529 = vpop.permute.xlu0 %528
      %532 = vset.pattern.permute.xlu0 0
      %533 = vperm.xlu0 %532, %v525
      %v534 = vpop.permute.xlu0 %533
      %vm536 = vcmask 588800
      %v538 = vsel %vm536, %v504, 0
      %v541 = vsel %vm536, %v505, 0
      %543 = vmatpush.msra.mxu0 0.0
      %544 = vmatpush.msra.mxu0 0.0
      %545 = vmatpush.msra.mxu0 0.0
      %546 = vmatpush.msra.mxu0 0.0
      %547 = vmatpush.msra.mxu0 0.0
      %548 = vmatpush.msra.mxu0 0.0
      %549 = vmatpush.msra.mxu0 0.0
      %550 = vmatpush.msra.mxu0 %v522
      %551 = vmatpush.msra.mxu0 %v520
      %552 = vmatpush.msra.mxu0 %v518
      %553 = vmatpush.msra.mxu0 %v516
      %554 = vmatpush.msra.mxu0 %v514
      %555 = vmatpush.msra.mxu0 %v512
      %556 = vmatpush.msra.mxu0 %v510
      %557 = vmatpush.msra.mxu0 %v508
      %558 = vmatpush.msra.mxu0 %v506
      %559 = vmatmul.f32.gmra.mxu0 %v538
      %v560 = vpop.f32.mrf.mxu0
      %v561 = vadd.f32 %v529, %v560
      %562 = vmatmul.f32.gmra.mxu0 %v541
      %v563 = vpop.f32.mrf.mxu0
      %v564 = vadd.f32 %v534, %v563
      %565 = vdwg.mxu0
      %566 = vmatpush.msra.mxu0 0.0
      %567 = vmatpush.msra.mxu0 0.0
      %568 = vmatpush.msra.mxu0 0.0
      %569 = vmatpush.msra.mxu0 0.0
      %570 = vmatpush.msra.mxu0 0.0
      %571 = vmatpush.msra.mxu0 0.0
      %572 = vmatpush.msra.mxu0 0.0
      %573 = vmatpush.msra.mxu0 %v523
      %574 = vmatpush.msra.mxu0 %v521
      %575 = vmatpush.msra.mxu0 %v519
      %576 = vmatpush.msra.mxu0 %v517
      %577 = vmatpush.msra.mxu0 %v515
      %578 = vmatpush.msra.mxu0 %v513
      %579 = vmatpush.msra.mxu0 %v511
      %580 = vmatpush.msra.mxu0 %v509
      %581 = vmatpush.msra.mxu0 %v507
      %582 = vmatmul.f32.gmra.mxu0 %v538
      %v583 = vpop.f32.mrf.mxu0
      %v584 = vadd.f32 %v529, %v583
      %585 = vmatmul.f32.gmra.mxu0 %v541
      %v586 = vpop.f32.mrf.mxu0
      %v587 = vadd.f32 %v534, %v586
      %588 = vdwg.mxu0
      %589 = vst [vmem:[%s286] sm:$0xff] %v564
      %590 = vst [vmem:[%s286 + $0x8] sm:$0xff] %v587
      %v591 = vmax.f32 %v561, 0.0
      %v592 = vmax.f32 %v584, 0.0
      %593 = vrot.lane.b32.xlu0 %v591, 17
      %v594 = vpop.permute.xlu0 %593
      %595 = vrot.lane.b32.xlu0 %v592, 17
      %v596 = vpop.permute.xlu0 %595
      %v597 = vsel %vm323, %v594, %v596
      %v598 = vsel %vm323, %v596, %v594
      %v599 = vld [vmem:[%s1] ss:$8 sm:$0x3]
      %v601 = vperm.slane %v599, 0
      %v602 = vperm.slane %v599, 1
      %v605 = vmul.f32 %v598, %v601
      %v606 = vmul.f32 %v597, %v602
      %607 = vst [vmem:[#allocation3] sm:$0xff] %v605
      %608 = vst [vmem:[#allocation3 + $0x8] sm:$0xff] %v606
      %609 = vrot.lane.b32.xlu0 %v591, 16
      %v610 = vpop.permute.xlu0 %609
      %611 = vrot.lane.b32.xlu0 %v592, 16
      %v612 = vpop.permute.xlu0 %611
      %v613 = vsel %vm345, %v610, %v612
      %v614 = vsel %vm345, %v612, %v610
      %v615 = vld [vmem:[%s348] ss:$8 sm:$0x3]
      %v617 = vperm.slane %v615, 0
      %v618 = vperm.slane %v615, 1
      %v621 = vmul.f32 %v614, %v617
      %v622 = vmul.f32 %v613, %v618
      %623 = vst [vmem:[#allocation3 + $0x10] sm:$0xff] %v621
      %624 = vst [vmem:[#allocation3 + $0x18] sm:$0xff] %v622
      %625 = vrot.lane.b32.xlu0 %v591, 15
      %v626 = vpop.permute.xlu0 %625
      %627 = vrot.lane.b32.xlu0 %v592, 15
      %v628 = vpop.permute.xlu0 %627
      %v629 = vsel %vm368, %v626, %v628
      %v630 = vsel %vm368, %v628, %v626
      %v631 = vld [vmem:[%s371] ss:$8 sm:$0x3]
      %v633 = vperm.slane %v631, 0
      %v634 = vperm.slane %v631, 1
      %v637 = vmul.f32 %v630, %v633
      %v638 = vmul.f32 %v629, %v634
      %639 = vst [vmem:[#allocation3 + $0x20] sm:$0xff] %v637
      %640 = vst [vmem:[#allocation3 + $0x28] sm:$0xff] %v638
      %641 = vrot.lane.b32.xlu0 %v591, 1
      %v642 = vpop.permute.xlu0 %641
      %643 = vrot.lane.b32.xlu0 %v592, 1
      %v644 = vpop.permute.xlu0 %643
      %v645 = vsel %vm391, %v642, %v644
      %v646 = vsel %vm391, %v644, %v642
      %v647 = vld [vmem:[%s394] ss:$8 sm:$0x3]
      %v649 = vperm.slane %v647, 0
      %v650 = vperm.slane %v647, 1
      %v653 = vmul.f32 %v646, %v649
      %v654 = vmul.f32 %v645, %v650
      %655 = vst [vmem:[#allocation3 + $0x30] sm:$0xff] %v653
      %656 = vst [vmem:[#allocation3 + $0x38] sm:$0xff] %v654
      %657 = vst [vmem:[#allocation3 + $0x40] sm:$0xff] %v591
      %658 = vst [vmem:[#allocation3 + $0x48] sm:$0xff] %v592
      %659 = vrot.lane.b32.xlu0 %v591, 127
      %v660 = vpop.permute.xlu0 %659
      %661 = vrot.lane.b32.xlu0 %v592, 127
      %v662 = vpop.permute.xlu0 %661
      %v663 = vsel %vm421, %v660, %v662
      %v664 = vsel %vm421, %v662, %v660
      %v665 = vld [vmem:[%s424] ss:$8 sm:$0x3]
      %v667 = vperm.slane %v665, 0
      %v668 = vperm.slane %v665, 1
      %v671 = vmul.f32 %v663, %v667
      %v672 = vmul.f32 %v664, %v668
      %673 = vst [vmem:[#allocation3 + $0x50] sm:$0xff] %v671
      %674 = vst [vmem:[#allocation3 + $0x58] sm:$0xff] %v672
      %675 = vrot.lane.b32.xlu0 %v591, 113
      %v676 = vpop.permute.xlu0 %675
      %677 = vrot.lane.b32.xlu0 %v592, 113
      %v678 = vpop.permute.xlu0 %677
      %v679 = vsel %vm444, %v676, %v678
      %v680 = vsel %vm444, %v678, %v676
      %v681 = vld [vmem:[%s447] ss:$8 sm:$0x3]
      %v683 = vperm.slane %v681, 0
      %v684 = vperm.slane %v681, 1
      %v687 = vmul.f32 %v679, %v683
      %v688 = vmul.f32 %v680, %v684
      %689 = vst [vmem:[#allocation3 + $0x60] sm:$0xff] %v687
      %690 = vst [vmem:[#allocation3 + $0x68] sm:$0xff] %v688
      %691 = vrot.lane.b32.xlu0 %v591, 112
      %v692 = vpop.permute.xlu0 %691
      %693 = vrot.lane.b32.xlu0 %v592, 112
      %v694 = vpop.permute.xlu0 %693
      %v695 = vsel %vm467, %v692, %v694
      %v696 = vsel %vm467, %v694, %v692
      %v697 = vld [vmem:[%s470] ss:$8 sm:$0x3]
      %v699 = vperm.slane %v697, 0
      %v700 = vperm.slane %v697, 1
      %v703 = vmul.f32 %v695, %v699
      %v704 = vmul.f32 %v696, %v700
      %705 = vst [vmem:[#allocation3 + $0x70] sm:$0xff] %v703
      %706 = vst [vmem:[#allocation3 + $0x78] sm:$0xff] %v704
      %707 = vrot.lane.b32.xlu0 %v591, 111
      %v708 = vpop.permute.xlu0 %707
      %709 = vrot.lane.b32.xlu0 %v592, 111
      %v710 = vpop.permute.xlu0 %709
      %v711 = vsel %vm490, %v708, %v710
      %v712 = vsel %vm490, %v710, %v708
      %v713 = vld [vmem:[%s493] ss:$8 sm:$0x3]
      %v715 = vperm.slane %v713, 0
      %v716 = vperm.slane %v713, 1
      %v719 = vmul.f32 %v711, %v715
      %v720 = vmul.f32 %v712, %v716
      %721 = vst [vmem:[#allocation3 + $0x80] sm:$0xff] %v719
      %722 = vst [vmem:[#allocation3 + $0x88] sm:$0xff] %v720
      %v723 = vld [vmem:[%s4] sm:$0xff]
      %v724 = vld [vmem:[#allocation3] sm:$0xff]
      %v725 = vld [vmem:[#allocation3 + $0x8] sm:$0xff]
      %v726 = vld [vmem:[#allocation3 + $0x10] sm:$0xff]
      %v727 = vld [vmem:[#allocation3 + $0x18] sm:$0xff]
      %v728 = vld [vmem:[#allocation3 + $0x20] sm:$0xff]
      %v729 = vld [vmem:[#allocation3 + $0x28] sm:$0xff]
      %v730 = vld [vmem:[#allocation3 + $0x30] sm:$0xff]
      %v731 = vld [vmem:[#allocation3 + $0x38] sm:$0xff]
      %v732 = vld [vmem:[#allocation3 + $0x40] sm:$0xff]
      %v733 = vld [vmem:[#allocation3 + $0x48] sm:$0xff]
      %v734 = vld [vmem:[#allocation3 + $0x50] sm:$0xff]
      %v735 = vld [vmem:[#allocation3 + $0x58] sm:$0xff]
      %v736 = vld [vmem:[#allocation3 + $0x60] sm:$0xff]
      %v737 = vld [vmem:[#allocation3 + $0x68] sm:$0xff]
      %v738 = vld [vmem:[#allocation3 + $0x70] sm:$0xff]
      %v739 = vld [vmem:[#allocation3 + $0x78] sm:$0xff]
      %v740 = vld [vmem:[#allocation3 + $0x80] sm:$0xff]
      %v741 = vld [vmem:[#allocation3 + $0x88] sm:$0xff]
      %v742 = vld [vmem:[%s5] sm:$0xff]
      %744 = vset.pattern.permute.xlu0 0
      %745 = vperm.xlu0 %744, %v742
      %v746 = vpop.permute.xlu0 %745
      %v749 = vsel %vm536, %v723, 0
      %751 = vmatpush.msra.mxu0 0.0
      %752 = vmatpush.msra.mxu0 0.0
      %753 = vmatpush.msra.mxu0 0.0
      %754 = vmatpush.msra.mxu0 0.0
      %755 = vmatpush.msra.mxu0 0.0
      %756 = vmatpush.msra.mxu0 0.0
      %757 = vmatpush.msra.mxu0 0.0
      %758 = vmatpush.msra.mxu0 %v740
      %759 = vmatpush.msra.mxu0 %v738
      %760 = vmatpush.msra.mxu0 %v736
      %761 = vmatpush.msra.mxu0 %v734
      %762 = vmatpush.msra.mxu0 %v732
      %763 = vmatpush.msra.mxu0 %v730
      %764 = vmatpush.msra.mxu0 %v728
      %765 = vmatpush.msra.mxu0 %v726
      %766 = vmatpush.msra.mxu0 %v724
      %767 = vmatmul.f32.gmra.mxu0 %v749
      %v768 = vpop.f32.mrf.mxu0
      %v769 = vadd.f32 %v746, %v768
      %770 = vdwg.mxu0
      %771 = vmatpush.msra.mxu0 0.0
      %772 = vmatpush.msra.mxu0 0.0
      %773 = vmatpush.msra.mxu0 0.0
      %774 = vmatpush.msra.mxu0 0.0
      %775 = vmatpush.msra.mxu0 0.0
      %776 = vmatpush.msra.mxu0 0.0
      %777 = vmatpush.msra.mxu0 0.0
      %778 = vmatpush.msra.mxu0 %v741
      %779 = vmatpush.msra.mxu0 %v739
      %780 = vmatpush.msra.mxu0 %v737
      %781 = vmatpush.msra.mxu0 %v735
      %782 = vmatpush.msra.mxu0 %v733
      %783 = vmatpush.msra.mxu0 %v731
      %784 = vmatpush.msra.mxu0 %v729
      %785 = vmatpush.msra.mxu0 %v727
      %786 = vmatpush.msra.mxu0 %v725
      %787 = vmatmul.f32.gmra.mxu0 %v749
      %v788 = vpop.f32.mrf.mxu0
      %v789 = vadd.f32 %v746, %v788
      %790 = vdwg.mxu0
      %791 = vst [vmem:[%s291] sm:$0xff] %v769
      %792 = vst [vmem:[%s291 + $0x8] sm:$0xff] %v789
      %p793 = scmp.lt.s32.totalorder %s19, 1
      %s794 = scalar_select %p793, %s19, 1
      %s795 = smul.addr %s794, 2
      %s796 = smul.addr %s795, 8
      %s797 = scalar_lea.vmem %s6, %s796
      %p798 = scmp.lt.s32.totalorder %s19, 1
      %s799 = scalar_select %p798, %s19, 1
      %s800 = smul.addr %s799, 2
      %s801 = smul.addr %s800, 8
      %s802 = scalar_lea.vmem %s7, %s801
      // Predicated region
      $region45: #{_fused_forward.1} parent=43 // pred_check
        %p803 = pneg %p168
      $region46: #{_fused_forward.1} parent=43 // pred_check_branch
        %805 = sbr.rel (%p803) target = $region48
      $region47: #{_fused_forward.1} parent=43 // pred_region
        _
      $region48: #{_fused_forward.1} parent=43 // pred_fallthru
        _
      // Predicated region
      $region49: #{_fused_forward.1} parent=43 // pred_check
        %p806 = pneg %p194
      $region50: #{_fused_forward.1} parent=43 // pred_check_branch
        %808 = sbr.rel (%p806) target = $region52
      $region51: #{_fused_forward.1} parent=43 // pred_region
        _
      $region52: #{_fused_forward.1} parent=43 // pred_fallthru
        _
    $region44: #{_fused_forward.1} parent=5 // pred_fallthru
      _
    %p809 = scmp.le.s32.totalorder 2, %s14
    // Predicated region
    $region53: #{_fused_forward.1} parent=5 // pred_check
      %p810 = pneg %p809
    $region54: #{_fused_forward.1} parent=5 // pred_check_branch
      %812 = sbr.rel (%p810) target = $region56
    $region55: #{_fused_forward.1} parent=5 // pred_region
      %s813 = ssub.s32 %s14, 2
      // Predicated region
      $region57: #{_fused_forward.1} parent=55 // pred_check
        %p814 = pneg %p174
      $region58: #{_fused_forward.1} parent=55 // pred_check_branch
        %816 = sbr.rel (%p814) target = $region60
      $region59: #{_fused_forward.1} parent=55 // pred_region
        %p817 = scmp.lt.s32.totalorder %s20, 1
        %s818 = scalar_select %p817, %s20, 1
        %s819 = smul.addr %s818, 2
        %s820 = smul.addr %s819, 8
        %s821 = scalar_lea.vmem %s6, %s820
      $region60: #{_fused_forward.1} parent=55 // pred_fallthru
        _
      // Predicated region
      $region61: #{_fused_forward.1} parent=55 // pred_check
        %p822 = pneg %p200
      $region62: #{_fused_forward.1} parent=55 // pred_check_branch
        %824 = sbr.rel (%p822) target = $region64
      $region63: #{_fused_forward.1} parent=55 // pred_region
        %p825 = scmp.lt.s32.totalorder %s20, 1
        %s826 = scalar_select %p825, %s20, 1
        %s827 = smul.addr %s826, 2
        %s828 = smul.addr %s827, 8
        %s829 = scalar_lea.vmem %s7, %s828
      $region64: #{_fused_forward.1} parent=55 // pred_fallthru
        _
    $region56: #{_fused_forward.1} parent=5 // pred_fallthru
      _
  $region6: #{_fused_forward.1} parent=0 // loop_footer
    %s18 = sadd.s32 1, %s14
  $region7: #{_fused_forward.1} parent=0 // loop_footer_branch
    %13 = sbr.rel target = $region3
  $region8: #{_fused_forward.1} parent=0 // loop_exit
    _

</llo_original>
